<compile_context>
chip_gen: v5e
topology: v5e:2x2
jax: 0.10.0
libtpu: 0.0.40
codegen_flags: <defaults>
</compile_context>

<pallas_src>
import functools

import jax
import jax.numpy as jnp
from jax.experimental import pallas as pl
from jax.experimental.pallas import tpu as pltpu

EPS = 1e-5
NEG_SLOPE = 0.2


def _round_up(x, m):
    return (x + m - 1) // m * m


def _conv_stats_kernel(p_ref, w_ref, sum_ref, sumsq_ref):
    """Phase 1: per-tile conv matmul; accumulate global per-channel sum / sumsq."""
    @pl.when(pl.program_id(0) == 0)
    def _():
        sum_ref[...] = jnp.zeros_like(sum_ref)
        sumsq_ref[...] = jnp.zeros_like(sumsq_ref)

    y = jnp.dot(p_ref[...], w_ref[...], preferred_element_type=jnp.float32)
    sum_ref[...] += jnp.sum(y, axis=0, keepdims=True)
    sumsq_ref[...] += jnp.sum(y * y, axis=0, keepdims=True)


def _norm_apply_kernel(p_ref, w_ref, sum_ref, sumsq_ref, gamma_ref, beta_ref,
                       out_ref, *, inv_m):
    """Phase 2: recompute conv tile, fused BN scale/shift + LeakyReLU(0.2)."""
    # Fold BN (batch stats, biased var) + affine into one scale/shift per channel.
    mean = sum_ref[...] * inv_m
    var = jnp.maximum(sumsq_ref[...] * inv_m - mean * mean, 0.0)
    scale = gamma_ref[...] * jax.lax.rsqrt(var + EPS)
    shift = beta_ref[...] - mean * scale

    y = jnp.dot(p_ref[...], w_ref[...], preferred_element_type=jnp.float32)
    y = y * scale + shift
    out_ref[...] = jnp.where(y >= 0, y, NEG_SLOPE * y).astype(out_ref.dtype)


def cnn_block(x, weight, gamma, beta, *, stride=2, padding=1, tile_m=512):
    """x: (N, Cin, H, W) NCHW f32. weight: (Cout, Cin, KH, KW) OIHW.
    gamma, beta: (Cout,). Returns (N, Cout, Ho, Wo) NCHW f32."""
    N, Cin, H, W = x.shape
    Cout, _, KH, KW = weight.shape
    Ho = (H + 2 * padding - KH) // stride + 1
    Wo = (W + 2 * padding - KW) // stride + 1
    M = N * Ho * Wo
    K = KH * KW * Cin

    # --- glue: reflect pad + im2col, emitted in bf16 (halves HBM traffic) ---
    # TODO(synk): fuse im2col into the kernel (memory_space=pl.ANY + manual
    # strided make_async_copy) to avoid materializing the (M, K) matrix in HBM.
    xp = jnp.pad(x, ((0, 0), (0, 0), (padding, padding), (padding, padding)),
                 mode="reflect")
    xp = jnp.transpose(xp, (0, 2, 3, 1)).astype(jnp.bfloat16)   # (N, Hp, Wp, Cin)
    cols = []
    for kh in range(KH):
        for kw in range(KW):
            cols.append(xp[:, kh:kh + stride * Ho:stride,
                           kw:kw + stride * Wo:stride, :])       # (N, Ho, Wo, Cin)
    patches = jnp.concatenate(cols, axis=-1).reshape(M, K)       # (M, K) bf16

    # --- pad to lane/sublane-friendly sizes ---
    k_pad = _round_up(K, 128)                 # lane-dense patch loads, MXU-aligned K
    c_pad = _round_up(Cout, 128)              # lane-dense output (unmasked vst)
    tm = min(tile_m, _round_up(M, 16))        # bf16 sublane packing -> multiple of 16
    m_pad = _round_up(M, tm)

    patches_p = jnp.pad(patches, ((0, m_pad - M), (0, k_pad - K)))
    w_mat = jnp.transpose(weight, (2, 3, 1, 0)).reshape(K, Cout).astype(jnp.bfloat16)
    w_p = jnp.pad(w_mat, ((0, k_pad - K), (0, c_pad - Cout)))
    gamma_p = jnp.pad(gamma.astype(jnp.float32), (0, c_pad - Cout)).reshape(1, c_pad)
    beta_p = jnp.pad(beta.astype(jnp.float32), (0, c_pad - Cout)).reshape(1, c_pad)

    grid = (m_pad // tm,)
    p_spec = pl.BlockSpec((tm, k_pad), lambda i: (i, 0))
    w_spec = pl.BlockSpec((k_pad, c_pad), lambda i: (0, 0))
    vec_spec = pl.BlockSpec((1, c_pad), lambda i: (0, 0))

    # --- phase 1: conv matmul + global per-channel sum / sum-of-squares ---
    sums, sumsq = pl.pallas_call(
        _conv_stats_kernel,
        grid=grid,
        in_specs=[p_spec, w_spec],
        out_specs=(vec_spec, vec_spec),
        out_shape=(jax.ShapeDtypeStruct((1, c_pad), jnp.float32),
                   jax.ShapeDtypeStruct((1, c_pad), jnp.float32)),
        compiler_params=pltpu.CompilerParams(dimension_semantics=("arbitrary",)),
    )(patches_p, w_p)

    # --- phase 2: recompute conv tile, fused BN scale/shift + LeakyReLU ---
    out_p = pl.pallas_call(
        functools.partial(_norm_apply_kernel, inv_m=1.0 / M),
        grid=grid,
        in_specs=[p_spec, w_spec, vec_spec, vec_spec, vec_spec, vec_spec],
        out_specs=pl.BlockSpec((tm, c_pad), lambda i: (i, 0)),
        out_shape=jax.ShapeDtypeStruct((m_pad, c_pad), jnp.float32),
        compiler_params=pltpu.CompilerParams(dimension_semantics=("parallel",)),
    )(patches_p, w_p, sums, sumsq, gamma_p, beta_p)

    # --- glue: drop padding, back to NCHW ---
    out = out_p[:M, :Cout].reshape(N, Ho, Wo, Cout)
    return jnp.transpose(out, (0, 3, 1, 2))


def ref_forward(x, weight, gamma, beta, *, stride=2, padding=1):
    """Plain-JAX reference reproducing the PyTorch CNNBlock forward (train mode)."""
    xp = jnp.pad(x, ((0, 0), (0, 0), (padding, padding), (padding, padding)),
                 mode="reflect")
    y = jax.lax.conv_general_dilated(
        xp, weight, window_strides=(stride, stride), padding="VALID",
        dimension_numbers=("NCHW", "OIHW", "NCHW"))
    mean = y.mean(axis=(0, 2, 3), keepdims=True)
    var = ((y - mean) ** 2).mean(axis=(0, 2, 3), keepdims=True)     # biased
    yh = (y - mean) * jax.lax.rsqrt(var + EPS)
    yb = yh * gamma.reshape(1, -1, 1, 1) + beta.reshape(1, -1, 1, 1)
    return jnp.where(yb >= 0, yb, NEG_SLOPE * yb)


if __name__ == "__main__":
    # Small shapes consistent with the module: CNNBlock(in_channels=4, out_channels=8)
    N, Cin, H, W = 2, 4, 16, 16
    Cout, KH, KW = 8, 4, 4

    key = jax.random.PRNGKey(0)
    kx, kw_ = jax.random.split(key)
    x = jax.random.normal(kx, (N, Cin, H, W), dtype=jnp.float32)

    fan_in = Cin * KH * KW
    weight = jax.random.normal(kw_, (Cout, Cin, KH, KW), dtype=jnp.float32) / jnp.sqrt(fan_in)
    gamma = jnp.ones((Cout,), dtype=jnp.float32)   # BatchNorm2d weight init
    beta = jnp.zeros((Cout,), dtype=jnp.float32)   # BatchNorm2d bias init

    out = jax.block_until_ready(cnn_block(x, weight, gamma, beta))
    assert out.shape == (N, Cout, H // 2, W // 2), out.shape

    # Tight check: reference fed the same bf16-quantized conv inputs (isolates
    # kernel correctness from the intentional bf16 input cast).
    x_q = x.astype(jnp.bfloat16).astype(jnp.float32)
    w_q = weight.astype(jnp.bfloat16).astype(jnp.float32)
    ref_q = jax.block_until_ready(ref_forward(x_q, w_q, gamma, beta))
    assert jnp.allclose(out, ref_q, atol=2e-3, rtol=2e-3), \
        float(jnp.max(jnp.abs(out - ref_q)))

    # Loose check vs the true f32 PyTorch-equivalent forward (bf16 MXU inputs).
    ref = jax.block_until_ready(ref_forward(x, weight, gamma, beta))
    assert jnp.allclose(out, ref, atol=5e-2, rtol=5e-2), \
        float(jnp.max(jnp.abs(out - ref)))

    print("KERNEL_OK")
</pallas_src>

<mosaic_0001>
module attributes {stable_mosaic.version = 11 : i64} {
  func.func @_conv_stats_kernel(%arg0: i32, %arg1: memref<128x128xbf16, #tpu.memory_space<vmem>>, %arg2: memref<128x128xbf16, #tpu.memory_space<vmem>>, %arg3: memref<1x128xf32, #tpu.memory_space<vmem>>, %arg4: memref<1x128xf32, #tpu.memory_space<vmem>>) attributes {dimension_semantics = [#tpu.dimension_semantics<arbitrary>], iteration_bounds = array<i64: 1>, scalar_prefetch = 0 : i64, scratch_operands = 0 : i64, tpu.core_type = #tpu.core_type<tc>, window_params = [{transform_indices = @transform_0, window_bounds = array<i64: 128, 128>}, {pipeline_mode = #tpu.pipeline_mode<synchronous>, transform_indices = @transform_1, window_bounds = array<i64: 128, 128>}, {pipeline_mode = #tpu.pipeline_mode<synchronous>, transform_indices = @transform_2, window_bounds = array<i64: 1, 128>}, {pipeline_mode = #tpu.pipeline_mode<synchronous>, transform_indices = @transform_3, window_bounds = array<i64: 1, 128>}]} {
    %c0_i32 = arith.constant 0 : i32
    %0 = arith.cmpi eq, %arg0, %c0_i32 : i32
    %1 = arith.extui %0 : i1 to i32
    %c0_i32_0 = arith.constant 0 : i32
    %2 = arith.cmpi ne, %1, %c0_i32_0 : i32
    scf.if %2 {
      %cst_14 = arith.constant 0.000000e+00 : f32
      %17 = vector.broadcast %cst_14 : f32 to vector<1x128xf32>
      %c0_15 = arith.constant 0 : index
      %c0_16 = arith.constant 0 : index
      %18 = vector.load %arg3[%c0_15, %c0_16] : memref<1x128xf32, #tpu.memory_space<vmem>>, vector<1x128xf32>
      tpu.vector_store %arg3[%c0_15, %c0_16], %17 {strides = array<i32>} : memref<1x128xf32, #tpu.memory_space<vmem>>, vector<1x128xf32>,
      %cst_17 = arith.constant 0.000000e+00 : f32
      %19 = vector.broadcast %cst_17 : f32 to vector<1x128xf32>
      %c0_18 = arith.constant 0 : index
      %c0_19 = arith.constant 0 : index
      %20 = vector.load %arg4[%c0_18, %c0_19] : memref<1x128xf32, #tpu.memory_space<vmem>>, vector<1x128xf32>
      tpu.vector_store %arg4[%c0_18, %c0_19], %19 {strides = array<i32>} : memref<1x128xf32, #tpu.memory_space<vmem>>, vector<1x128xf32>,
    } else {
    }
    %c0 = arith.constant 0 : index
    %c0_1 = arith.constant 0 : index
    %3 = vector.load %arg1[%c0, %c0_1] : memref<128x128xbf16, #tpu.memory_space<vmem>>, vector<128x128xbf16>
    %c0_2 = arith.constant 0 : index
    %c0_3 = arith.constant 0 : index
    %4 = vector.load %arg2[%c0_2, %c0_3] : memref<128x128xbf16, #tpu.memory_space<vmem>>, vector<128x128xbf16>
    %cst = arith.constant dense<0.000000e+00> : vector<128x128xf32>
    %5 = tpu.matmul %3, %4, %cst {dimension_numbers = #tpu.dot_dimension_numbers<[1], [0], [0], [1], [0, 0, 1, 1], [], []>} : vector<128x128xbf16>, vector<128x128xbf16>, vector<128x128xf32> -> vector<128x128xf32>
    %c0_4 = arith.constant 0 : index
    %c0_5 = arith.constant 0 : index
    %6 = vector.load %arg3[%c0_4, %c0_5] : memref<1x128xf32, #tpu.memory_space<vmem>>, vector<1x128xf32>
    %cst_6 = arith.constant dense<0.000000e+00> : vector<128xf32>
    %7 = vector.multi_reduction <add>, %5, %cst_6 [0] : vector<128x128xf32> to vector<128xf32>
    %8 = vector.shape_cast %7 : vector<128xf32> to vector<1x128xf32>
    %9 = arith.addf %6, %8 : vector<1x128xf32>
    %c0_7 = arith.constant 0 : index
    %c0_8 = arith.constant 0 : index
    %10 = vector.load %arg3[%c0_7, %c0_8] : memref<1x128xf32, #tpu.memory_space<vmem>>, vector<1x128xf32>
    tpu.vector_store %arg3[%c0_7, %c0_8], %9 {strides = array<i32>} : memref<1x128xf32, #tpu.memory_space<vmem>>, vector<1x128xf32>,
    %c0_9 = arith.constant 0 : index
    %c0_10 = arith.constant 0 : index
    %11 = vector.load %arg4[%c0_9, %c0_10] : memref<1x128xf32, #tpu.memory_space<vmem>>, vector<1x128xf32>
    %12 = arith.mulf %5, %5 : vector<128x128xf32>
    %cst_11 = arith.constant dense<0.000000e+00> : vector<128xf32>
    %13 = vector.multi_reduction <add>, %12, %cst_11 [0] : vector<128x128xf32> to vector<128xf32>
    %14 = vector.shape_cast %13 : vector<128xf32> to vector<1x128xf32>
    %15 = arith.addf %11, %14 : vector<1x128xf32>
    %c0_12 = arith.constant 0 : index
    %c0_13 = arith.constant 0 : index
    %16 = vector.load %arg4[%c0_12, %c0_13] : memref<1x128xf32, #tpu.memory_space<vmem>>, vector<1x128xf32>
    tpu.vector_store %arg4[%c0_12, %c0_13], %15 {strides = array<i32>} : memref<1x128xf32, #tpu.memory_space<vmem>>, vector<1x128xf32>,
    return
  }
  func.func @transform_0(%arg0: i32) -> (i32, i32) {
    %c0_i32 = arith.constant 0 : i32
    %c0_i32_0 = arith.constant 0 : i32
    return %arg0, %c0_i32 : i32, i32
  }
  func.func @transform_1(%arg0: i32) -> (i32, i32) {
    %c0_i32 = arith.constant 0 : i32
    %c0_i32_0 = arith.constant 0 : i32
    %c0_i32_1 = arith.constant 0 : i32
    return %c0_i32, %c0_i32_0 : i32, i32
  }
  func.func @transform_2(%arg0: i32) -> (i32, i32) {
    %c0_i32 = arith.constant 0 : i32
    %c0_i32_0 = arith.constant 0 : i32
    %c0_i32_1 = arith.constant 0 : i32
    return %c0_i32, %c0_i32_0 : i32, i32
  }
  func.func @transform_3(%arg0: i32) -> (i32, i32) {
    %c0_i32 = arith.constant 0 : i32
    %c0_i32_0 = arith.constant 0 : i32
    %c0_i32_1 = arith.constant 0 : i32
    return %c0_i32, %c0_i32_0 : i32, i32
  }
}

</mosaic_0001>

<llo_original>
// kernel: tpu_custom_call.1
$region0: #{tpu_custom_call.1}
  #allocation0 [shape = 'u32[]', space=smem, size = 0x4, offset = 0x4, fixed_abs, tag = 'smem constant byte address 0x4 - core index']
  #allocation1 [shape = 'u32[72,128]{1,0:T(1,128)}', space=vmem, size = 0x9000, scoped, tag = 'internal scratch']
  %s0 = inlined_call_operand.hbm [shape: bf16[128,128], index: 0, kind: input, shape index: {}]
  %s1 = inlined_call_operand.hbm [shape: bf16[128,128], index: 1, kind: input, shape index: {}]
  %s2 = inlined_call_operand.hbm [shape: f32[1,128], index: 2, kind: output, shape index: {0}]
  %s3 = inlined_call_operand.hbm [shape: f32[1,128], index: 3, kind: output, shape index: {1}]
  %4 = xla_tuple %s2, %s3
  %s5 = sld [smem:[#allocation0]]
  $region38: #{tpu_custom_call.1} parent=0
    _
  %s7 = ssub.s32 1, %s5
  %s8 = scalar_select 0, %s7, %s5
  $region1: #{tpu_custom_call.1} parent=0
    #allocation2 [shape = 'u8[32768]{0}', space=vmem, size = 0x8000, scoped, tag = 'input window, operand 0, single buffered']
    #allocation3 [shape = 's32[1]{0}', space=sflag, size = 0x4, scoped, tag = 'scoped memory for tpu_custom_call.1']
    #allocation4 [shape = 's32[1]{0}', space=sflag, size = 0x4, scoped, tag = 'scoped memory for tpu_custom_call.1']
    #allocation5 [shape = 'u8[32768]{0}', space=vmem, size = 0x8000, scoped, tag = 'input window, operand 1, single buffered']
    #allocation6 [shape = 's32[1]{0}', space=sflag, size = 0x4, scoped, tag = 'scoped memory for tpu_custom_call.1']
    #allocation7 [shape = 'u8[512]{0}', space=vmem, size = 0x400, scoped, tag = 'output window, operand 0, single buffered']
    #allocation8 [shape = 'u8[512]{0}', space=vmem, size = 0x400, scoped, tag = 'output window, operand 1, single buffered']
    #allocation9 [shape = 's32[1]{0}', space=sflag, size = 0x4, scoped, tag = 'scoped memory for tpu_custom_call.1']
    %9 = vsyncpa [#allocation3], 0
    %10 = vsyncpa [#allocation6], 0
    %11 = vsyncpa [#allocation4], 0
    %12 = vsyncpa [#allocation9], 0
    // Predicated region
    $region2: #{tpu_custom_call.1} parent=1 // pred_check
      _
    $region3: #{tpu_custom_call.1} parent=1 // pred_check_branch
      %14 = sbr.rel (0) target = $region5
    $region4: #{tpu_custom_call.1} parent=1 // pred_region
      %16 = vsyncadd [#allocation3], 0
      %s17 = sshll.u32 %s0, 4
      %s18 = int_to_ptr.hbm [resolvable:$true] %s17
      %s19 = sshll.u32 [#allocation2], 4
      %s20 = int_to_ptr.vmem [resolvable:$true] %s19
      %25 = dma.hbm_to_vmem [thread:$0]  %s18, 1024, %s20, [#allocation3], 64, 64, 4
    $region5: #{tpu_custom_call.1} parent=1 // pred_fallthru
      _
    // Predicated region
    $region6: #{tpu_custom_call.1} parent=1 // pred_check
      _
    $region7: #{tpu_custom_call.1} parent=1 // pred_check_branch
      %27 = sbr.rel (0) target = $region9
    $region8: #{tpu_custom_call.1} parent=1 // pred_region
      %29 = vsyncadd [#allocation6], 0
      %s30 = sshll.u32 %s1, 4
      %s31 = int_to_ptr.hbm [resolvable:$true] %s30
      %s32 = sshll.u32 [#allocation5], 4
      %s33 = int_to_ptr.vmem [resolvable:$true] %s32
      %38 = dma.hbm_to_vmem [thread:$0]  %s31, 1024, %s33, [#allocation6], 64, 64, 4
    $region9: #{tpu_custom_call.1} parent=1 // pred_fallthru
      _
    // Predicated region
    $region10: #{tpu_custom_call.1} parent=1 // pred_check
      _
    $region11: #{tpu_custom_call.1} parent=1 // pred_check_branch
      %40 = sbr.rel (0) target = $region13
    $region12: #{tpu_custom_call.1} parent=1 // pred_region
      %42 = dma.done [#allocation3], 1024
    $region13: #{tpu_custom_call.1} parent=1 // pred_fallthru
      _
    // Predicated region
    $region14: #{tpu_custom_call.1} parent=1 // pred_check
      _
    $region15: #{tpu_custom_call.1} parent=1 // pred_check_branch
      %44 = sbr.rel (0) target = $region17
    $region16: #{tpu_custom_call.1} parent=1 // pred_region
      %46 = dma.done [#allocation6], 1024
    $region17: #{tpu_custom_call.1} parent=1 // pred_fallthru
      _
    %p47 = scmp.eq.s32.totalorder 0, 0
    // Predicated region
    $region18: #{tpu_custom_call.1} parent=1 // pred_check
      %p48 = pneg %p47
    $region19: #{tpu_custom_call.1} parent=1 // pred_check_branch
      %50 = sbr.rel (%p48) target = $region21
    $region20: #{tpu_custom_call.1} parent=1 // pred_region
      %51 = vst [vmem:[#allocation7] sm:$0x1] 0.0
      %52 = vst [vmem:[#allocation8] sm:$0x1] 0.0
    $region21: #{tpu_custom_call.1} parent=1 // pred_fallthru
      _
    %v53 = vld [vmem:[#allocation2] sm:$0xf]
    %v54 = vld [vmem:[#allocation2 + $0x4] sm:$0xf]
    %v55 = vld [vmem:[#allocation2 + $0x8] sm:$0xf]
    %v56 = vld [vmem:[#allocation2 + $0xc] sm:$0xf]
    %v57 = vld [vmem:[#allocation2 + $0x10] sm:$0xf]
    %v58 = vld [vmem:[#allocation2 + $0x14] sm:$0xf]
    %v59 = vld [vmem:[#allocation2 + $0x18] sm:$0xf]
    %v60 = vld [vmem:[#allocation2 + $0x1c] sm:$0xf]
    %v61 = vld [vmem:[#allocation2 + $0x20] sm:$0xf]
    %v62 = vld [vmem:[#allocation2 + $0x24] sm:$0xf]
    %v63 = vld [vmem:[#allocation2 + $0x28] sm:$0xf]
    %v64 = vld [vmem:[#allocation2 + $0x2c] sm:$0xf]
    %v65 = vld [vmem:[#allocation2 + $0x30] sm:$0xf]
    %v66 = vld [vmem:[#allocation2 + $0x34] sm:$0xf]
    %v67 = vld [vmem:[#allocation2 + $0x38] sm:$0xf]
    %v68 = vld [vmem:[#allocation2 + $0x3c] sm:$0xf]
    %v69 = vld [vmem:[#allocation5] sm:$0xf]
    %v70 = vld [vmem:[#allocation5 + $0x4] sm:$0xf]
    %v71 = vld [vmem:[#allocation5 + $0x8] sm:$0xf]
    %v72 = vld [vmem:[#allocation5 + $0xc] sm:$0xf]
    %v73 = vld [vmem:[#allocation5 + $0x10] sm:$0xf]
    %v74 = vld [vmem:[#allocation5 + $0x14] sm:$0xf]
    %v75 = vld [vmem:[#allocation5 + $0x18] sm:$0xf]
    %v76 = vld [vmem:[#allocation5 + $0x1c] sm:$0xf]
    %v77 = vld [vmem:[#allocation5 + $0x20] sm:$0xf]
    %v78 = vld [vmem:[#allocation5 + $0x24] sm:$0xf]
    %v79 = vld [vmem:[#allocation5 + $0x28] sm:$0xf]
    %v80 = vld [vmem:[#allocation5 + $0x2c] sm:$0xf]
    %v81 = vld [vmem:[#allocation5 + $0x30] sm:$0xf]
    %v82 = vld [vmem:[#allocation5 + $0x34] sm:$0xf]
    %v83 = vld [vmem:[#allocation5 + $0x38] sm:$0xf]
    %v84 = vld [vmem:[#allocation5 + $0x3c] sm:$0xf]
    %v101 = vunpack.c.l.b16 %v53
    %v102 = vunpack.c.l.b16 %v54
    %v103 = vunpack.c.l.b16 %v55
    %v104 = vunpack.c.l.b16 %v56
    %v105 = vunpack.c.l.b16 %v57
    %v106 = vunpack.c.l.b16 %v58
    %v107 = vunpack.c.l.b16 %v59
    %v108 = vunpack.c.l.b16 %v60
    %v109 = vunpack.c.l.b16 %v61
    %v110 = vunpack.c.l.b16 %v62
    %v111 = vunpack.c.l.b16 %v63
    %v112 = vunpack.c.l.b16 %v64
    %v113 = vunpack.c.l.b16 %v65
    %v114 = vunpack.c.l.b16 %v66
    %v115 = vunpack.c.l.b16 %v67
    %v116 = vunpack.c.l.b16 %v68
    %v117 = vpack.c.b16 %v102, %v101
    %v118 = vpack.c.b16 %v104, %v103
    %v119 = vpack.c.b16 %v106, %v105
    %v120 = vpack.c.b16 %v108, %v107
    %v121 = vpack.c.b16 %v110, %v109
    %v122 = vpack.c.b16 %v112, %v111
    %v123 = vpack.c.b16 %v114, %v113
    %v124 = vpack.c.b16 %v116, %v115
    %v149 = vunpack.c.l.b16 %v69
    %v150 = vunpack.c.l.b16 %v70
    %v151 = vunpack.c.l.b16 %v71
    %v152 = vunpack.c.l.b16 %v72
    %v153 = vunpack.c.l.b16 %v73
    %v154 = vunpack.c.l.b16 %v74
    %v155 = vunpack.c.l.b16 %v75
    %v156 = vunpack.c.l.b16 %v76
    %v157 = vunpack.c.l.b16 %v77
    %v158 = vunpack.c.l.b16 %v78
    %v159 = vunpack.c.l.b16 %v79
    %v160 = vunpack.c.l.b16 %v80
    %v161 = vunpack.c.l.b16 %v81
    %v162 = vunpack.c.l.b16 %v82
    %v163 = vunpack.c.l.b16 %v83
    %v164 = vunpack.c.l.b16 %v84
    %v165 = vpack.c.b16 %v150, %v149
    %v166 = vpack.c.b16 %v152, %v151
    %v167 = vpack.c.b16 %v154, %v153
    %v168 = vpack.c.b16 %v156, %v155
    %v169 = vpack.c.b16 %v158, %v157
    %v170 = vpack.c.b16 %v160, %v159
    %v171 = vpack.c.b16 %v162, %v161
    %v172 = vpack.c.b16 %v164, %v163
    %181 = vmatpush.bf16.msra.mxu0 %v172
    %182 = vmatpush.bf16.msra.mxu0 %v171
    %183 = vmatpush.bf16.msra.mxu0 %v170
    %184 = vmatpush.bf16.msra.mxu0 %v169
    %185 = vmatpush.bf16.msra.mxu0 %v168
    %186 = vmatpush.bf16.msra.mxu0 %v167
    %187 = vmatpush.bf16.msra.mxu0 %v166
    %188 = vmatpush.bf16.msra.mxu0 %v165
    %189 = vmatmul.bf16.gmra.mxu0 %v117
    %v190 = vpop.f32.mrf.mxu0
    %v191 = vadd.f32 0.0, %v190
    %v192 = vpop.f32.mrf.mxu0
    %v193 = vadd.f32 0.0, %v192
    %194 = vmatmul.bf16.gmra.mxu0 %v118
    %v195 = vpop.f32.mrf.mxu0
    %v196 = vadd.f32 0.0, %v195
    %v197 = vpop.f32.mrf.mxu0
    %v198 = vadd.f32 0.0, %v197
    %199 = vmatmul.bf16.gmra.mxu0 %v119
    %v200 = vpop.f32.mrf.mxu0
    %v201 = vadd.f32 0.0, %v200
    %v202 = vpop.f32.mrf.mxu0
    %v203 = vadd.f32 0.0, %v202
    %204 = vmatmul.bf16.gmra.mxu0 %v120
    %v205 = vpop.f32.mrf.mxu0
    %v206 = vadd.f32 0.0, %v205
    %v207 = vpop.f32.mrf.mxu0
    %v208 = vadd.f32 0.0, %v207
    %209 = vmatmul.bf16.gmra.mxu0 %v121
    %v210 = vpop.f32.mrf.mxu0
    %v211 = vadd.f32 0.0, %v210
    %v212 = vpop.f32.mrf.mxu0
    %v213 = vadd.f32 0.0, %v212
    %214 = vmatmul.bf16.gmra.mxu0 %v122
    %v215 = vpop.f32.mrf.mxu0
    %v216 = vadd.f32 0.0, %v215
    %v217 = vpop.f32.mrf.mxu0
    %v218 = vadd.f32 0.0, %v217
    %219 = vmatmul.bf16.gmra.mxu0 %v123
    %v220 = vpop.f32.mrf.mxu0
    %v221 = vadd.f32 0.0, %v220
    %v222 = vpop.f32.mrf.mxu0
    %v223 = vadd.f32 0.0, %v222
    %224 = vmatmul.bf16.gmra.mxu0 %v124
    %v225 = vpop.f32.mrf.mxu0
    %v226 = vadd.f32 0.0, %v225
    %v227 = vpop.f32.mrf.mxu0
    %v228 = vadd.f32 0.0, %v227
    %229 = vdwg.mxu0
    %v230 = vld [vmem:[#allocation7] sm:$0x1]
    %v231 = vadd.f32 %v191, %v193
    %v232 = vadd.f32 %v231, %v196
    %v233 = vadd.f32 %v232, %v198
    %v234 = vadd.f32 %v233, %v201
    %v235 = vadd.f32 %v234, %v203
    %v236 = vadd.f32 %v235, %v206
    %v237 = vadd.f32 %v236, %v208
    %v238 = vadd.f32 %v237, %v211
    %v239 = vadd.f32 %v238, %v213
    %v240 = vadd.f32 %v239, %v216
    %v241 = vadd.f32 %v240, %v218
    %v242 = vadd.f32 %v241, %v221
    %v243 = vadd.f32 %v242, %v223
    %v244 = vadd.f32 %v243, %v226
    %v245 = vadd.f32 %v244, %v228
    %v246 = vrot.slane %v245, 4
    %v247 = vadd.f32 %v245, %v246
    %v248 = vrot.slane %v247, 2
    %v249 = vadd.f32 %v247, %v248
    %v250 = vrot.slane %v249, 1
    %v251 = vadd.f32 %v249, %v250
    %v252 = vadd.f32 %v230, %v251
    %253 = vst [vmem:[#allocation7] sm:$0x1] %v252
    %v254 = vld [vmem:[#allocation8] sm:$0x1]
    %v255 = vmul.f32 %v191, %v191
    %v256 = vmul.f32 %v193, %v193
    %v257 = vmul.f32 %v196, %v196
    %v258 = vmul.f32 %v198, %v198
    %v259 = vmul.f32 %v201, %v201
    %v260 = vmul.f32 %v203, %v203
    %v261 = vmul.f32 %v206, %v206
    %v262 = vmul.f32 %v208, %v208
    %v263 = vmul.f32 %v211, %v211
    %v264 = vmul.f32 %v213, %v213
    %v265 = vmul.f32 %v216, %v216
    %v266 = vmul.f32 %v218, %v218
    %v267 = vmul.f32 %v221, %v221
    %v268 = vmul.f32 %v223, %v223
    %v269 = vmul.f32 %v226, %v226
    %v270 = vmul.f32 %v228, %v228
    %v271 = vadd.f32 %v255, %v256
    %v272 = vadd.f32 %v271, %v257
    %v273 = vadd.f32 %v272, %v258
    %v274 = vadd.f32 %v273, %v259
    %v275 = vadd.f32 %v274, %v260
    %v276 = vadd.f32 %v275, %v261
    %v277 = vadd.f32 %v276, %v262
    %v278 = vadd.f32 %v277, %v263
    %v279 = vadd.f32 %v278, %v264
    %v280 = vadd.f32 %v279, %v265
    %v281 = vadd.f32 %v280, %v266
    %v282 = vadd.f32 %v281, %v267
    %v283 = vadd.f32 %v282, %v268
    %v284 = vadd.f32 %v283, %v269
    %v285 = vadd.f32 %v284, %v270
    %v286 = vrot.slane %v285, 4
    %v287 = vadd.f32 %v285, %v286
    %v288 = vrot.slane %v287, 2
    %v289 = vadd.f32 %v287, %v288
    %v290 = vrot.slane %v289, 1
    %v291 = vadd.f32 %v289, %v290
    %v292 = vadd.f32 %v254, %v291
    %293 = vst [vmem:[#allocation8] sm:$0x1] %v292
    // Predicated region
    $region22: #{tpu_custom_call.1} parent=1 // pred_check
      _
    $region23: #{tpu_custom_call.1} parent=1 // pred_check_branch
      %295 = sbr.rel (0) target = $region25
    $region24: #{tpu_custom_call.1} parent=1 // pred_region
      %297 = vsyncadd [#allocation4], 0
      %s299 = sshll.u32 [#allocation7], 4
      %s300 = int_to_ptr.vmem [resolvable:$true] %s299
      %s301 = sshll.u32 %s2, 4
      %s302 = int_to_ptr.hbm [resolvable:$true] %s301
      %304 = dma.vmem_to_hbm [thread:$0]  %s300, 16, %s302, [#allocation4]
    $region25: #{tpu_custom_call.1} parent=1 // pred_fallthru
      _
    // Predicated region
    $region26: #{tpu_custom_call.1} parent=1 // pred_check
      _
    $region27: #{tpu_custom_call.1} parent=1 // pred_check_branch
      %306 = sbr.rel (0) target = $region29
    $region28: #{tpu_custom_call.1} parent=1 // pred_region
      %308 = vsyncadd [#allocation9], 0
      %s310 = sshll.u32 [#allocation8], 4
      %s311 = int_to_ptr.vmem [resolvable:$true] %s310
      %s312 = sshll.u32 %s3, 4
      %s313 = int_to_ptr.hbm [resolvable:$true] %s312
      %315 = dma.vmem_to_hbm [thread:$0]  %s311, 16, %s313, [#allocation9]
    $region29: #{tpu_custom_call.1} parent=1 // pred_fallthru
      _
    // Predicated region
    $region30: #{tpu_custom_call.1} parent=1 // pred_check
      _
    $region31: #{tpu_custom_call.1} parent=1 // pred_check_branch
      %317 = sbr.rel (0) target = $region33
    $region32: #{tpu_custom_call.1} parent=1 // pred_region
      %319 = dma.done [#allocation4], 16
    $region33: #{tpu_custom_call.1} parent=1 // pred_fallthru
      _
    // Predicated region
    $region34: #{tpu_custom_call.1} parent=1 // pred_check
      _
    $region35: #{tpu_custom_call.1} parent=1 // pred_check_branch
      %321 = sbr.rel (0) target = $region37
    $region36: #{tpu_custom_call.1} parent=1 // pred_region
      %323 = dma.done [#allocation9], 16
    $region37: #{tpu_custom_call.1} parent=1 // pred_fallthru
      _
    %324 = vsyncpa [#allocation3], 1
    %325 = vsyncpa [#allocation6], 1
    %326 = vsyncpa [#allocation4], 1
    %327 = vsyncpa [#allocation9], 1

</llo_original>
